<compile_context>
chip_gen: v5e
topology: v5e:2x2
jax: 0.10.0
libtpu: 0.0.40
codegen_flags: <defaults>
</compile_context>

<pallas_src>
import jax
import jax.numpy as jnp
from jax.experimental import pallas as pl
from jax.experimental.pallas import tpu as pltpu


def _round_up(x, m):
    return ((x + m - 1) // m) * m


def value_net_kernel(x_ref, w1_ref, b1_ref, w2_ref, b2_ref, w3_ref, b3_ref, o_ref):
    """One batch tile of the fused 3-layer MLP.

    x_ref:  [TB, D]    f32 (cast to bf16 in-kernel)
    w1_ref: [D, Hp]    bf16   b1_ref: [1, Hp] f32
    w2_ref: [Hp, Hp]   bf16   b2_ref: [1, Hp] f32
    w3_ref: [8, Hp]    bf16 (row 0 = w3^T, rows 1..7 zero)
    b3_ref: [1, 1]     f32 scalar (SMEM)
    o_ref:  [1, 1, TB] f32 (lane-dense row of per-sample values)
    """
    x = x_ref[...].astype(jnp.bfloat16)                                    # [TB, D]
    h1 = jnp.dot(x, w1_ref[...], preferred_element_type=jnp.float32)       # [TB, Hp] f32
    h1 = jnp.maximum(h1 + b1_ref[...], 0.0).astype(jnp.bfloat16)           # ReLU f32, keep bf16
    h2 = jnp.dot(h1, w2_ref[...], preferred_element_type=jnp.float32)      # [TB, Hp] f32
    h2 = jnp.maximum(h2 + b2_ref[...], 0.0).astype(jnp.bfloat16)
    # Final Linear(Hp, 1) as w3 @ h2^T on the MXU (contract both minor dims, same
    # pattern as q@k^T): result is [8, TB] with row 0 real -> lane-dense store.
    v = jax.lax.dot_general(w3_ref[...], h2, (((1,), (1,)), ((), ())),
                            preferred_element_type=jnp.float32)            # [8, TB]
    o_ref[0] = v[0:1, :] + b3_ref[0, 0]                                    # [1, TB]


def pack_params(params, hidden_pad=128):
    """Pad hidden dim to a lane-friendly multiple of 128 and cast matmul weights
    to bf16 (zero-padding is exact: padded lanes stay 0 through ReLU)."""
    w1, b1 = params["w1"], params["b1"]        # [D, H], [1, H]
    w2, b2 = params["w2"], params["b2"]        # [H, H], [1, H]
    w3, b3 = params["w3"], params["b3"]        # [H, 1], [1, 1]
    D, H = w1.shape
    Hp = _round_up(H, hidden_pad)
    ph = Hp - H

    w1p = jnp.pad(w1, ((0, 0), (0, ph))).astype(jnp.bfloat16)              # [D, Hp]
    b1p = jnp.pad(b1, ((0, 0), (0, ph))).astype(jnp.float32)               # [1, Hp]
    w2p = jnp.pad(w2, ((0, ph), (0, ph))).astype(jnp.bfloat16)             # [Hp, Hp]
    b2p = jnp.pad(b2, ((0, 0), (0, ph))).astype(jnp.float32)               # [1, Hp]
    # w3 [H,1] -> [8, Hp] bf16 block: row 0 is w3^T (zero-padded), rows 1..7 zero.
    w3p = jnp.pad(w3.T, ((0, 7), (0, ph))).astype(jnp.bfloat16)            # [8, Hp]
    b3p = b3.astype(jnp.float32)                                           # [1, 1]
    return {"w1": w1p, "b1": b1p, "w2": w2p, "b2": b2p, "w3": w3p, "b3": b3p}


def value_network_forward(state, packed, tile_b=2048):
    """Fused MLP forward.

    Args:
      state:  [B, input_dim] float32 (cast to bf16 inside the kernel)
      packed: output of pack_params()
    Returns:
      [B, 1] float32 state values.
    """
    B, D = state.shape
    Hp = packed["w1"].shape[1]

    # Batch tile: large tiles amortize the ~0.35us per-grid-step cost and keep
    # DMAs big, but cap so v7x's two TensorCores both get grid steps and the
    # pipeline has prologue/epilogue overlap on large batches.
    TB = min(_round_up(tile_b, 8), _round_up(B, 8))
    if B >= 2048:
        TB = min(TB, _round_up(pl.cdiv(B, 2), 8))    # >= 2 grid steps (dual-TC v7x)
    if B >= 8192:
        TB = min(TB, _round_up(pl.cdiv(B, 4), 8))    # >= 4 grid steps (pipelining)
    TB = max(TB, 8)
    num_tiles = pl.cdiv(B, TB)                        # partial last tile is masked

    const = lambda i: (0, 0)                          # params stay VMEM-resident

    param_bytes = (D * Hp + Hp * Hp + 8 * Hp) * 2 + 2 * Hp * 4 + 4
    cost = pl.CostEstimate(
        flops=2 * num_tiles * TB * (D * Hp + Hp * Hp + 8 * Hp),
        transcendentals=0,
        bytes_accessed=B * D * 4 + B * 4 + param_bytes,
    )

    out = pl.pallas_call(
        value_net_kernel,
        out_shape=jax.ShapeDtypeStruct((num_tiles, 1, TB), jnp.float32),
        grid=(num_tiles,),
        in_specs=[
            pl.BlockSpec((TB, D), lambda i: (i, 0)),               # state tile (pipelined)
            pl.BlockSpec((D, Hp), const),                          # w1
            pl.BlockSpec((1, Hp), const),                          # b1
            pl.BlockSpec((Hp, Hp), const),                         # w2
            pl.BlockSpec((1, Hp), const),                          # b2
            pl.BlockSpec((8, Hp), const),                          # w3 (row block)
            pl.BlockSpec(memory_space=pltpu.MemorySpace.SMEM),     # b3 scalar
        ],
        out_specs=pl.BlockSpec((1, 1, TB), lambda i: (i, 0, 0)),
        compiler_params=pltpu.CompilerParams(
            dimension_semantics=("parallel",),
            # True footprint is a few MiB even at TB=2048; a loose limit avoids
            # forcing the compiler into smaller internal tiling. Safe on v7x (64 MiB).
            vmem_limit_bytes=32 * 1024 * 1024,
        ),
        cost_estimate=cost,
    )(state, packed["w1"], packed["b1"], packed["w2"], packed["b2"],
      packed["w3"], packed["b3"])

    # (num_tiles, 1, TB) lane-dense rows -> (B, 1); tail garbage rows sliced off.
    return out.reshape(-1)[:B][:, None]


def init_params(key, input_dim=96, hidden_dim=64):
    """Deterministic synthetic init (PyTorch-style uniform +-1/sqrt(fan_in)).
    Weights stored as [in, out] so the kernel computes x @ W + b."""
    ks = jax.random.split(key, 6)

    def lin(kw, kb, fan_in, fan_out):
        bound = 1.0 / jnp.sqrt(fan_in)
        w = jax.random.uniform(kw, (fan_in, fan_out), jnp.float32, -bound, bound)
        b = jax.random.uniform(kb, (1, fan_out), jnp.float32, -bound, bound)
        return w, b

    w1, b1 = lin(ks[0], ks[1], input_dim, hidden_dim)
    w2, b2 = lin(ks[2], ks[3], hidden_dim, hidden_dim)
    w3, b3 = lin(ks[4], ks[5], hidden_dim, 1)
    return {"w1": w1, "b1": b1, "w2": w2, "b2": b2, "w3": w3, "b3": b3}


if __name__ == "__main__":
    key = jax.random.PRNGKey(0)
    k_param, k_state = jax.random.split(key)

    input_dim, hidden_dim, batch = 96, 64, 8
    params = init_params(k_param, input_dim, hidden_dim)
    packed = pack_params(params)
    state = jax.random.normal(k_state, (batch, input_dim), jnp.float32)

    out = value_network_forward(state, packed)
    out = jax.block_until_ready(out)
    assert out.shape == (batch, 1)

    # Reference mirroring the kernel's bf16-input / f32-accumulate arithmetic.
    w1b = params["w1"].astype(jnp.bfloat16)
    w2b = params["w2"].astype(jnp.bfloat16)
    w3b = params["w3"].astype(jnp.bfloat16)
    x16 = state.astype(jnp.bfloat16)
    h1 = jnp.maximum(jnp.dot(x16, w1b, preferred_element_type=jnp.float32)
                     + params["b1"], 0.0).astype(jnp.bfloat16)
    h2 = jnp.maximum(jnp.dot(h1, w2b, preferred_element_type=jnp.float32)
                     + params["b2"], 0.0).astype(jnp.bfloat16)
    ref_bf16 = jnp.dot(h2, w3b, preferred_element_type=jnp.float32) + params["b3"]
    assert jnp.allclose(out, ref_bf16, atol=1e-2, rtol=1e-2), "mismatch vs bf16 reference"

    # Loose sanity check against the pure-f32 PyTorch-equivalent forward.
    h1f = jnp.maximum(state @ params["w1"] + params["b1"], 0.0)
    h2f = jnp.maximum(h1f @ params["w2"] + params["b2"], 0.0)
    ref_f32 = h2f @ params["w3"] + params["b3"]
    assert jnp.allclose(out, ref_f32, atol=5e-2, rtol=5e-2), "mismatch vs f32 reference"

    print("KERNEL_OK")
</pallas_src>

<mosaic_0001>
module attributes {stable_mosaic.version = 11 : i64} {
  func.func @value_net_kernel(%arg0: i32, %arg1: memref<8x96xf32, #tpu.memory_space<vmem>>, %arg2: memref<96x128xbf16, #tpu.memory_space<vmem>>, %arg3: memref<1x128xf32, #tpu.memory_space<vmem>>, %arg4: memref<128x128xbf16, #tpu.memory_space<vmem>>, %arg5: memref<1x128xf32, #tpu.memory_space<vmem>>, %arg6: memref<8x128xbf16, #tpu.memory_space<vmem>>, %arg7: memref<1x1xf32, #tpu.memory_space<smem>>, %arg8: memref<1x1x8xf32, #tpu.memory_space<vmem>>) attributes {dimension_semantics = [#tpu.dimension_semantics<parallel>], iteration_bounds = array<i64: 1>, scalar_prefetch = 0 : i64, scratch_operands = 0 : i64, tpu.core_type = #tpu.core_type<tc>, window_params = [{transform_indices = @transform_0, window_bounds = array<i64: 8, 96>}, {pipeline_mode = #tpu.pipeline_mode<synchronous>, transform_indices = @transform_1, window_bounds = array<i64: 96, 128>}, {pipeline_mode = #tpu.pipeline_mode<synchronous>, transform_indices = @transform_2, window_bounds = array<i64: 1, 128>}, {pipeline_mode = #tpu.pipeline_mode<synchronous>, transform_indices = @transform_3, window_bounds = array<i64: 128, 128>}, {pipeline_mode = #tpu.pipeline_mode<synchronous>, transform_indices = @transform_4, window_bounds = array<i64: 1, 128>}, {pipeline_mode = #tpu.pipeline_mode<synchronous>, transform_indices = @transform_5, window_bounds = array<i64: 8, 128>}, {transform_indices = @transform_6, window_bounds = array<i64: 1, 1>}, {transform_indices = @transform_7, window_bounds = array<i64: 1, 1, 8>}]} {
    %c0 = arith.constant 0 : index
    %c0_0 = arith.constant 0 : index
    %0 = vector.load %arg1[%c0, %c0_0] : memref<8x96xf32, #tpu.memory_space<vmem>>, vector<8x96xf32>
    %1 = arith.truncf %0 : vector<8x96xf32> to vector<8x96xbf16>
    %c0_1 = arith.constant 0 : index
    %c0_2 = arith.constant 0 : index
    %2 = vector.load %arg2[%c0_1, %c0_2] : memref<96x128xbf16, #tpu.memory_space<vmem>>, vector<96x128xbf16>
    %cst = arith.constant dense<0.000000e+00> : vector<8x128xf32>
    %3 = tpu.matmul %1, %2, %cst {dimension_numbers = #tpu.dot_dimension_numbers<[1], [0], [0], [1], [0, 0, 1, 1], [], []>} : vector<8x96xbf16>, vector<96x128xbf16>, vector<8x128xf32> -> vector<8x128xf32>
    %c0_3 = arith.constant 0 : index
    %c0_4 = arith.constant 0 : index
    %4 = vector.load %arg3[%c0_3, %c0_4] : memref<1x128xf32, #tpu.memory_space<vmem>>, vector<1x128xf32>
    %5 = vector.broadcast %4 : vector<1x128xf32> to vector<8x128xf32>
    %6 = arith.addf %3, %5 : vector<8x128xf32>
    %cst_5 = arith.constant 0.000000e+00 : f32
    %7 = vector.broadcast %cst_5 : f32 to vector<8x128xf32>
    %8 = arith.maximumf %6, %7 : vector<8x128xf32>
    %9 = arith.truncf %8 : vector<8x128xf32> to vector<8x128xbf16>
    %c0_6 = arith.constant 0 : index
    %c0_7 = arith.constant 0 : index
    %10 = vector.load %arg4[%c0_6, %c0_7] : memref<128x128xbf16, #tpu.memory_space<vmem>>, vector<128x128xbf16>
    %cst_8 = arith.constant dense<0.000000e+00> : vector<8x128xf32>
    %11 = tpu.matmul %9, %10, %cst_8 {dimension_numbers = #tpu.dot_dimension_numbers<[1], [0], [0], [1], [0, 0, 1, 1], [], []>} : vector<8x128xbf16>, vector<128x128xbf16>, vector<8x128xf32> -> vector<8x128xf32>
    %c0_9 = arith.constant 0 : index
    %c0_10 = arith.constant 0 : index
    %12 = vector.load %arg5[%c0_9, %c0_10] : memref<1x128xf32, #tpu.memory_space<vmem>>, vector<1x128xf32>
    %13 = vector.broadcast %12 : vector<1x128xf32> to vector<8x128xf32>
    %14 = arith.addf %11, %13 : vector<8x128xf32>
    %cst_11 = arith.constant 0.000000e+00 : f32
    %15 = vector.broadcast %cst_11 : f32 to vector<8x128xf32>
    %16 = arith.maximumf %14, %15 : vector<8x128xf32>
    %17 = arith.truncf %16 : vector<8x128xf32> to vector<8x128xbf16>
    %c0_12 = arith.constant 0 : index
    %c0_13 = arith.constant 0 : index
    %18 = vector.load %arg6[%c0_12, %c0_13] : memref<8x128xbf16, #tpu.memory_space<vmem>>, vector<8x128xbf16>
    %cst_14 = arith.constant dense<0.000000e+00> : vector<8x8xf32>
    %19 = tpu.matmul %18, %17, %cst_14 {dimension_numbers = #tpu.dot_dimension_numbers<[1], [1], [0], [0], [0, 0, 1, 0], [], []>} : vector<8x128xbf16>, vector<8x128xbf16>, vector<8x8xf32> -> vector<8x8xf32>
    %20 = vector.extract_strided_slice %19 {offsets = [0, 0], sizes = [1, 8], strides = [1, 1]} : vector<8x8xf32> to vector<1x8xf32>
    %c0_15 = arith.constant 0 : index
    %c0_16 = arith.constant 0 : index
    %21 = memref.load %arg7[%c0_15, %c0_16] : memref<1x1xf32, #tpu.memory_space<smem>>
    %22 = vector.broadcast %21 : f32 to vector<1x8xf32>
    %23 = arith.addf %20, %22 : vector<1x8xf32>
    %c0_17 = arith.constant 0 : index
    %c0_18 = arith.constant 0 : index
    %c0_19 = arith.constant 0 : index
    %24 = vector.load %arg8[%c0_17, %c0_18, %c0_19] : memref<1x1x8xf32, #tpu.memory_space<vmem>>, vector<1x1x8xf32>
    %25 = vector.shape_cast %24 : vector<1x1x8xf32> to vector<1x8xf32>
    %26 = vector.shape_cast %23 : vector<1x8xf32> to vector<1x1x8xf32>
    tpu.vector_store %arg8[%c0_17, %c0_18, %c0_19], %26 {strides = array<i32>} : memref<1x1x8xf32, #tpu.memory_space<vmem>>, vector<1x1x8xf32>,
    return
  }
  func.func @transform_0(%arg0: i32) -> (i32, i32) {
    %c0_i32 = arith.constant 0 : i32
    %c0_i32_0 = arith.constant 0 : i32
    return %arg0, %c0_i32 : i32, i32
  }
  func.func @transform_1(%arg0: i32) -> (i32, i32) {
    %c0_i32 = arith.constant 0 : i32
    %c0_i32_0 = arith.constant 0 : i32
    %c0_i32_1 = arith.constant 0 : i32
    return %c0_i32, %c0_i32_0 : i32, i32
  }
  func.func @transform_2(%arg0: i32) -> (i32, i32) {
    %c0_i32 = arith.constant 0 : i32
    %c0_i32_0 = arith.constant 0 : i32
    %c0_i32_1 = arith.constant 0 : i32
    return %c0_i32, %c0_i32_0 : i32, i32
  }
  func.func @transform_3(%arg0: i32) -> (i32, i32) {
    %c0_i32 = arith.constant 0 : i32
    %c0_i32_0 = arith.constant 0 : i32
    %c0_i32_1 = arith.constant 0 : i32
    return %c0_i32, %c0_i32_0 : i32, i32
  }
  func.func @transform_4(%arg0: i32) -> (i32, i32) {
    %c0_i32 = arith.constant 0 : i32
    %c0_i32_0 = arith.constant 0 : i32
    %c0_i32_1 = arith.constant 0 : i32
    return %c0_i32, %c0_i32_0 : i32, i32
  }
  func.func @transform_5(%arg0: i32) -> (i32, i32) {
    %c0_i32 = arith.constant 0 : i32
    %c0_i32_0 = arith.constant 0 : i32
    %c0_i32_1 = arith.constant 0 : i32
    return %c0_i32, %c0_i32_0 : i32, i32
  }
  func.func @transform_6(%arg0: i32) -> (i32, i32) {
    %c0_i32 = arith.constant 0 : i32
    %c0_i32_0 = arith.constant 0 : i32
    %c0_i32_1 = arith.constant 0 : i32
    return %c0_i32, %c0_i32_0 : i32, i32
  }
  func.func @transform_7(%arg0: i32) -> (i32, i32, i32) {
    %c0_i32 = arith.constant 0 : i32
    %c0_i32_0 = arith.constant 0 : i32
    %c0_i32_1 = arith.constant 0 : i32
    return %arg0, %c0_i32, %c0_i32_0 : i32, i32, i32
  }
}

</mosaic_0001>

<llo_original>
// kernel: tpu_custom_call.1
$region0: #{tpu_custom_call.1}
  #allocation0 [shape = 'u32[]', space=smem, size = 0x4, offset = 0x4, fixed_abs, tag = 'smem constant byte address 0x4 - core index']
  #allocation1 [shape = 'u32[72,128]{1,0:T(1,128)}', space=vmem, size = 0x9000, scoped, tag = 'internal scratch']
  #allocation2 [shape = 'f32[1,1]{1,0:T(1,128)S(6)}', space=smem, size = 0x200, scoped, tag = 'scoped memory for tpu_custom_call.1']
  %s0 = inlined_call_operand.hbm [shape: f32[8,96], index: 0, kind: input, shape index: {}]
  %s1 = inlined_call_operand.hbm [shape: bf16[96,128], index: 1, kind: input, shape index: {}]
  %s2 = inlined_call_operand.vmem [shape: f32[1,128], index: 2, kind: input, shape index: {}]
  %s3 = inlined_call_operand.hbm [shape: bf16[128,128], index: 3, kind: input, shape index: {}]
  %s4 = inlined_call_operand.vmem [shape: f32[1,128], index: 4, kind: input, shape index: {}]
  %s5 = inlined_call_operand.vmem [shape: bf16[8,128], index: 5, kind: input, shape index: {}]
  %s6 = inlined_call_operand.<no memory space> [shape: f32[1,1], index: 6, kind: input, shape index: {}]
  %s7 = inlined_call_operand.hbm [shape: f32[1,1,8], index: 7, kind: output, shape index: {}]
  %s8 = sld [smem:[#allocation0]]
  $region50: #{tpu_custom_call.1} parent=0
    _
  %s10 = ssub.s32 1, %s8
  %s11 = scalar_select 0, %s10, %s8
  %12 = sst [smem:[#allocation2]] %s6
  $region1: #{tpu_custom_call.1} parent=0
    #allocation3 [shape = 'u8[4096]{0}', space=vmem, size = 0x1000, scoped, tag = 'input window, operand 0, single buffered']
    #allocation4 [shape = 's32[1]{0}', space=sflag, size = 0x4, scoped, tag = 'scoped memory for tpu_custom_call.1']
    #allocation5 [shape = 's32[1]{0}', space=sflag, size = 0x4, scoped, tag = 'scoped memory for tpu_custom_call.1']
    #allocation6 [shape = 'u8[24576]{0}', space=vmem, size = 0x6000, scoped, tag = 'input window, operand 1, single buffered']
    #allocation7 [shape = 's32[1]{0}', space=sflag, size = 0x4, scoped, tag = 'scoped memory for tpu_custom_call.1']
    #allocation8 [shape = 'u8[32768]{0}', space=vmem, size = 0x8000, scoped, tag = 'input window, operand 3, single buffered']
    #allocation9 [shape = 'u8[512]{0}', space=vmem, size = 0x400, scoped, tag = 'output window, operand 0, single buffered']
    %13 = vsyncpa [#allocation4], 0
    %14 = vsyncpa [#allocation7], 0
    %15 = vsyncpa [#allocation5], 0
    // Predicated region
    $region2: #{tpu_custom_call.1} parent=1 // pred_check
      _
    $region3: #{tpu_custom_call.1} parent=1 // pred_check_branch
      %17 = sbr.rel (0) target = $region5
    $region4: #{tpu_custom_call.1} parent=1 // pred_region
      %19 = vsyncadd [#allocation4], 0
      %s21 = sshll.u32 %s0, 4
      %s22 = int_to_ptr.hbm [resolvable:$true] %s21
      %s23 = sshll.u32 [#allocation3], 4
      %s24 = int_to_ptr.vmem [resolvable:$true] %s23
      %26 = dma.hbm_to_vmem [thread:$0]  %s22, 128, %s24, [#allocation4]
    $region5: #{tpu_custom_call.1} parent=1 // pred_fallthru
      _
    // Predicated region
    $region6: #{tpu_custom_call.1} parent=1 // pred_check
      _
    $region7: #{tpu_custom_call.1} parent=1 // pred_check_branch
      %28 = sbr.rel (0) target = $region9
    $region8: #{tpu_custom_call.1} parent=1 // pred_region
      %30 = vsyncadd [#allocation7], 0
      %s31 = sshll.u32 %s1, 4
      %s32 = int_to_ptr.hbm [resolvable:$true] %s31
      %s33 = sshll.u32 [#allocation6], 4
      %s34 = int_to_ptr.vmem [resolvable:$true] %s33
      %39 = dma.hbm_to_vmem [thread:$0]  %s32, 768, %s34, [#allocation7], 64, 64, 4
    $region9: #{tpu_custom_call.1} parent=1 // pred_fallthru
      _
    // Predicated region
    $region10: #{tpu_custom_call.1} parent=1 // pred_check
      _
    $region11: #{tpu_custom_call.1} parent=1 // pred_check_branch
      %41 = sbr.rel (0) target = $region13
    $region12: #{tpu_custom_call.1} parent=1 // pred_region
      _
    $region13: #{tpu_custom_call.1} parent=1 // pred_fallthru
      _
    // Predicated region
    $region14: #{tpu_custom_call.1} parent=1 // pred_check
      _
    $region15: #{tpu_custom_call.1} parent=1 // pred_check_branch
      %43 = sbr.rel (0) target = $region17
    $region16: #{tpu_custom_call.1} parent=1 // pred_region
      %45 = vsyncadd [#allocation7], 0
      %s46 = sshll.u32 %s3, 4
      %s47 = int_to_ptr.hbm [resolvable:$true] %s46
      %s48 = sshll.u32 [#allocation8], 4
      %s49 = int_to_ptr.vmem [resolvable:$true] %s48
      %54 = dma.hbm_to_vmem [thread:$0]  %s47, 1024, %s49, [#allocation7], 64, 64, 4
    $region17: #{tpu_custom_call.1} parent=1 // pred_fallthru
      _
    // Predicated region
    $region18: #{tpu_custom_call.1} parent=1 // pred_check
      _
    $region19: #{tpu_custom_call.1} parent=1 // pred_check_branch
      %56 = sbr.rel (0) target = $region21
    $region20: #{tpu_custom_call.1} parent=1 // pred_region
      _
    $region21: #{tpu_custom_call.1} parent=1 // pred_fallthru
      _
    // Predicated region
    $region22: #{tpu_custom_call.1} parent=1 // pred_check
      _
    $region23: #{tpu_custom_call.1} parent=1 // pred_check_branch
      %58 = sbr.rel (0) target = $region25
    $region24: #{tpu_custom_call.1} parent=1 // pred_region
      _
    $region25: #{tpu_custom_call.1} parent=1 // pred_fallthru
      _
    // Predicated region
    $region26: #{tpu_custom_call.1} parent=1 // pred_check
      _
    $region27: #{tpu_custom_call.1} parent=1 // pred_check_branch
      %60 = sbr.rel (0) target = $region29
    $region28: #{tpu_custom_call.1} parent=1 // pred_region
      _
    $region29: #{tpu_custom_call.1} parent=1 // pred_fallthru
      _
    // Predicated region
    $region30: #{tpu_custom_call.1} parent=1 // pred_check
      _
    $region31: #{tpu_custom_call.1} parent=1 // pred_check_branch
      %62 = sbr.rel (0) target = $region33
    $region32: #{tpu_custom_call.1} parent=1 // pred_region
      %64 = dma.done [#allocation4], 128
    $region33: #{tpu_custom_call.1} parent=1 // pred_fallthru
      _
    // Predicated region
    $region34: #{tpu_custom_call.1} parent=1 // pred_check
      _
    $region35: #{tpu_custom_call.1} parent=1 // pred_check_branch
      %66 = sbr.rel (0) target = $region37
    $region36: #{tpu_custom_call.1} parent=1 // pred_region
      %68 = dma.done [#allocation7], 768
    $region37: #{tpu_custom_call.1} parent=1 // pred_fallthru
      _
    // Predicated region
    $region38: #{tpu_custom_call.1} parent=1 // pred_check
      _
    $region39: #{tpu_custom_call.1} parent=1 // pred_check_branch
      %70 = sbr.rel (0) target = $region41
    $region40: #{tpu_custom_call.1} parent=1 // pred_region
      %72 = dma.done [#allocation7], 1024
    $region41: #{tpu_custom_call.1} parent=1 // pred_fallthru
      _
    %v74 = vld [vmem:[#allocation3] sm:$0xff]
    %v75 = vpack.c.bf16 %v74, %v74
    %v76 = vld [vmem:[#allocation6] sm:$0xf]
    %v77 = vld [vmem:[#allocation6 + $0x4] sm:$0xf]
    %v78 = vld [vmem:[#allocation6 + $0x8] sm:$0xf]
    %v79 = vld [vmem:[#allocation6 + $0xc] sm:$0xf]
    %v80 = vld [vmem:[#allocation6 + $0x10] sm:$0xf]
    %v81 = vld [vmem:[#allocation6 + $0x14] sm:$0xf]
    %v82 = vld [vmem:[#allocation6 + $0x18] sm:$0xf]
    %v83 = vld [vmem:[#allocation6 + $0x1c] sm:$0xf]
    %v84 = vld [vmem:[#allocation6 + $0x20] sm:$0xf]
    %v85 = vld [vmem:[#allocation6 + $0x24] sm:$0xf]
    %v86 = vld [vmem:[#allocation6 + $0x28] sm:$0xf]
    %v87 = vld [vmem:[#allocation6 + $0x2c] sm:$0xf]
    %v88 = vld [vmem:[%s2] sm:$0x1]
    %v90 = vperm.slane %v88, 0
    %v104 = vunpack.c.l.b16 %v76
    %v105 = vunpack.c.l.b16 %v77
    %v106 = vunpack.c.l.b16 %v78
    %v107 = vunpack.c.l.b16 %v79
    %v108 = vunpack.c.l.b16 %v80
    %v109 = vunpack.c.l.b16 %v81
    %v110 = vunpack.c.l.b16 %v82
    %v111 = vunpack.c.l.b16 %v83
    %v112 = vunpack.c.l.b16 %v84
    %v113 = vunpack.c.l.b16 %v85
    %v114 = vunpack.c.l.b16 %v86
    %v115 = vunpack.c.l.b16 %v87
    %v116 = vpack.c.b16 %v105, %v104
    %v117 = vpack.c.b16 %v107, %v106
    %v118 = vpack.c.b16 %v109, %v108
    %v119 = vpack.c.b16 %v111, %v110
    %v120 = vpack.c.b16 %v113, %v112
    %v121 = vpack.c.b16 %v115, %v114
    %vm128 = vcmask 785408
    %v130 = vsel %vm128, %v75, 0
    %132 = vmatpush.bf16.msra.mxu0 0
    %133 = vmatpush.bf16.msra.mxu0 0
    %134 = vmatpush.bf16.msra.mxu0 %v121
    %135 = vmatpush.bf16.msra.mxu0 %v120
    %136 = vmatpush.bf16.msra.mxu0 %v119
    %137 = vmatpush.bf16.msra.mxu0 %v118
    %138 = vmatpush.bf16.msra.mxu0 %v117
    %139 = vmatpush.bf16.msra.mxu0 %v116
    %140 = vmatmul.bf16.gmra.mxu0 %v130
    %v141 = vpop.f32.mrf.mxu0
    %v142 = vadd.f32 %v90, %v141
    %v143 = vpop.f32.mrf.mxu0
    %144 = vdwg.mxu0
    %v145 = vmax.f32 %v142, 0.0
    %v146 = vpack.c.bf16 %v145, %v145
    %v147 = vld [vmem:[#allocation8] sm:$0xf]
    %v148 = vld [vmem:[#allocation8 + $0x4] sm:$0xf]
    %v149 = vld [vmem:[#allocation8 + $0x8] sm:$0xf]
    %v150 = vld [vmem:[#allocation8 + $0xc] sm:$0xf]
    %v151 = vld [vmem:[#allocation8 + $0x10] sm:$0xf]
    %v152 = vld [vmem:[#allocation8 + $0x14] sm:$0xf]
    %v153 = vld [vmem:[#allocation8 + $0x18] sm:$0xf]
    %v154 = vld [vmem:[#allocation8 + $0x1c] sm:$0xf]
    %v155 = vld [vmem:[#allocation8 + $0x20] sm:$0xf]
    %v156 = vld [vmem:[#allocation8 + $0x24] sm:$0xf]
    %v157 = vld [vmem:[#allocation8 + $0x28] sm:$0xf]
    %v158 = vld [vmem:[#allocation8 + $0x2c] sm:$0xf]
    %v159 = vld [vmem:[#allocation8 + $0x30] sm:$0xf]
    %v160 = vld [vmem:[#allocation8 + $0x34] sm:$0xf]
    %v161 = vld [vmem:[#allocation8 + $0x38] sm:$0xf]
    %v162 = vld [vmem:[#allocation8 + $0x3c] sm:$0xf]
    %v163 = vld [vmem:[%s4] sm:$0x1]
    %v165 = vperm.slane %v163, 0
    %v183 = vunpack.c.l.b16 %v147
    %v184 = vunpack.c.l.b16 %v148
    %v185 = vunpack.c.l.b16 %v149
    %v186 = vunpack.c.l.b16 %v150
    %v187 = vunpack.c.l.b16 %v151
    %v188 = vunpack.c.l.b16 %v152
    %v189 = vunpack.c.l.b16 %v153
    %v190 = vunpack.c.l.b16 %v154
    %v191 = vunpack.c.l.b16 %v155
    %v192 = vunpack.c.l.b16 %v156
    %v193 = vunpack.c.l.b16 %v157
    %v194 = vunpack.c.l.b16 %v158
    %v195 = vunpack.c.l.b16 %v159
    %v196 = vunpack.c.l.b16 %v160
    %v197 = vunpack.c.l.b16 %v161
    %v198 = vunpack.c.l.b16 %v162
    %v199 = vpack.c.b16 %v184, %v183
    %v200 = vpack.c.b16 %v186, %v185
    %v201 = vpack.c.b16 %v188, %v187
    %v202 = vpack.c.b16 %v190, %v189
    %v203 = vpack.c.b16 %v192, %v191
    %v204 = vpack.c.b16 %v194, %v193
    %v205 = vpack.c.b16 %v196, %v195
    %v206 = vpack.c.b16 %v198, %v197
    %215 = vmatpush.bf16.msra.mxu0 %v206
    %216 = vmatpush.bf16.msra.mxu0 %v205
    %217 = vmatpush.bf16.msra.mxu0 %v204
    %218 = vmatpush.bf16.msra.mxu0 %v203
    %219 = vmatpush.bf16.msra.mxu0 %v202
    %220 = vmatpush.bf16.msra.mxu0 %v201
    %221 = vmatpush.bf16.msra.mxu0 %v200
    %222 = vmatpush.bf16.msra.mxu0 %v199
    %223 = vmatmul.bf16.gmra.mxu0 %v146
    %v224 = vpop.f32.mrf.mxu0
    %v225 = vadd.f32 %v165, %v224
    %v226 = vpop.f32.mrf.mxu0
    %227 = vdwg.mxu0
    %v228 = vmax.f32 %v225, 0.0
    %v229 = vpack.c.bf16 %v228, %v228
    %v230 = vld [vmem:[%s5] sm:$0xf]
    %231 = vmatpush.bf16.xpose.msra.mxu0 0
    %232 = vmatpush.bf16.xpose.msra.mxu0 0
    %233 = vmatpush.bf16.xpose.msra.mxu0 0
    %234 = vmatpush.bf16.xpose.msra.mxu0 0
    %235 = vmatpush.bf16.xpose.msra.mxu0 0
    %236 = vmatpush.bf16.xpose.msra.mxu0 0
    %237 = vmatpush.bf16.xpose.msra.mxu0 0
    %238 = vmatpush.bf16.xpose.msra.mxu0 %v229
    %239 = vmatmul.bf16.gmra.mxu0 %v230
    %v240 = vpop.f32.mrf.mxu0
    %v241 = vadd.f32 0.0, %v240
    %v242 = vpop.f32.mrf.mxu0
    %243 = vdwg.mxu0
    %s244 = sld [smem:[#allocation2]]
    %v245 = vstv %s244
    %v246 = vadd.f32 %v241, %v245
    %vm247 = vcmask 57344
    %248 = vst.msk [vmem:[#allocation9] sm:$0x1] %vm247, %v246
    // Predicated region
    $region42: #{tpu_custom_call.1} parent=1 // pred_check
      _
    $region43: #{tpu_custom_call.1} parent=1 // pred_check_branch
      %250 = sbr.rel (0) target = $region45
    $region44: #{tpu_custom_call.1} parent=1 // pred_region
      %252 = vsyncadd [#allocation5], 0
      %s254 = sshll.u32 [#allocation9], 4
      %s255 = int_to_ptr.vmem [resolvable:$true] %s254
      %s256 = sshll.u32 %s7, 4
      %s257 = int_to_ptr.hbm [resolvable:$true] %s256
      %259 = dma.vmem_to_hbm [thread:$0]  %s255, 16, %s257, [#allocation5]
    $region45: #{tpu_custom_call.1} parent=1 // pred_fallthru
      _
    // Predicated region
    $region46: #{tpu_custom_call.1} parent=1 // pred_check
      _
    $region47: #{tpu_custom_call.1} parent=1 // pred_check_branch
      %261 = sbr.rel (0) target = $region49
    $region48: #{tpu_custom_call.1} parent=1 // pred_region
      %263 = dma.done [#allocation5], 16
    $region49: #{tpu_custom_call.1} parent=1 // pred_fallthru
      _
    %264 = vsyncpa [#allocation4], 1
    %265 = vsyncpa [#allocation7], 1
    %266 = vsyncpa [#allocation5], 1

</llo_original>
